<compile_context>
chip_gen: v5e
topology: v5e:2x2
jax: 0.10.0
libtpu: 0.0.40
codegen_flags: <defaults>
</compile_context>

<pallas_src>
import jax
import jax.numpy as jnp
from jax.experimental import pallas as pl
from jax.experimental.pallas import tpu as pltpu


def _identity_copy_kernel(x_hbm, o_hbm, sem):
    """Copy the whole input array to the output with one HBM->HBM DMA."""
    cp = pltpu.make_async_copy(x_hbm, o_hbm, sem)
    cp.start()
    cp.wait()


def identity_copy(x):
    """Identity that materializes a fresh buffer via a single HBM->HBM DMA."""
    if x.size == 0:
        return x
    itemsize = jnp.dtype(x.dtype).itemsize
    return pl.pallas_call(
        _identity_copy_kernel,
        out_shape=jax.ShapeDtypeStruct(x.shape, x.dtype),
        in_specs=[pl.BlockSpec(memory_space=pl.ANY)],
        out_specs=pl.BlockSpec(memory_space=pl.ANY),
        scratch_shapes=[pltpu.SemaphoreType.DMA(())],
        cost_estimate=pl.CostEstimate(
            flops=0,
            transcendentals=0,
            bytes_accessed=2 * x.size * itemsize,
        ),
    )(x)


def identity_forward(x, *, copy=False):
    """Forward pass of Identity.

    Parameters
    ----------
    x : jax.Array
        Input node features.
    copy : bool
        If False (default), return x unchanged -- zero HBM traffic, matching
        the PyTorch module which returns the same tensor object.
        If True, return a bit-exact copy produced by the Pallas HBM->HBM DMA
        kernel (for callers that need a distinct output buffer).

    Returns
    -------
    jax.Array
        Output node features (== x).
    """
    if not copy:
        return x
    return identity_copy(x)


if __name__ == "__main__":
    key = jax.random.PRNGKey(0)

    # Small node-feature matrix: 16 nodes, 32 features.
    x = jax.random.normal(key, (16, 32), dtype=jnp.float32)

    # Default identity path: no data movement at all.
    y = identity_forward(x)
    jax.block_until_ready(y)
    assert y.shape == x.shape and y.dtype == x.dtype
    assert bool(jnp.all(y == x))

    # Pallas kernel path: single whole-array HBM->HBM DMA copy.
    y_copy = identity_forward(x, copy=True)
    jax.block_until_ready(y_copy)
    assert y_copy.shape == x.shape and y_copy.dtype == x.dtype
    assert bool(jnp.all(y_copy == x))

    # Odd, non-(8,128)-aligned shape: the full-array DMA handles it directly
    # (no lane-masked vector stores, no narrow-tile fallback needed).
    x_odd = jax.random.normal(jax.random.PRNGKey(1), (7, 33), dtype=jnp.float32)
    y_odd = identity_forward(x_odd, copy=True)
    jax.block_until_ready(y_odd)
    assert y_odd.shape == x_odd.shape and bool(jnp.all(y_odd == x_odd))

    print("KERNEL_OK")
</pallas_src>

<mosaic_0001>
module attributes {stable_mosaic.version = 11 : i64} {
  func.func @_identity_copy_kernel(%arg0: memref<16x32xf32, #tpu.memory_space<any>>, %arg1: memref<16x32xf32, #tpu.memory_space<any>>, %arg2: memref<!tpu.dma_semaphore, #tpu.memory_space<semaphore_mem>>) attributes {dimension_semantics = [], scalar_prefetch = 0 : i64, scratch_operands = 1 : i64, tpu.core_type = #tpu.core_type<tc>} {
    tpu.enqueue_dma source(%arg0 : memref<16x32xf32, #tpu.memory_space<any>>) target(%arg1 : memref<16x32xf32, #tpu.memory_space<any>>) target_semaphore(%arg2 : memref<!tpu.dma_semaphore, #tpu.memory_space<semaphore_mem>>)
    tpu.wait_dma2 semaphore(%arg2 : memref<!tpu.dma_semaphore, #tpu.memory_space<semaphore_mem>>) src(%arg0 : memref<16x32xf32, #tpu.memory_space<any>>) dst(%arg1 : memref<16x32xf32, #tpu.memory_space<any>>)
    return
  }
}

</mosaic_0001>

<llo_original>
// kernel: tpu_custom_call.1
$region0: #{tpu_custom_call.1}
  #allocation0 [shape = 'u32[]', space=smem, size = 0x4, offset = 0x4, fixed_abs, tag = 'smem constant byte address 0x4 - core index']
  #allocation1 [shape = 'u32[72,128]{1,0:T(1,128)}', space=vmem, size = 0x9000, scoped, tag = 'internal scratch']
  #allocation2 [shape = 's32[1]{0}', space=sflag, size = 0x4, scoped, tag = 'scratch operand']
  #allocation3 [shape = 's32[]', space=sflag, size = 0x4, offset = 0, fixed_abs, tag = 'sflag constant byte address 0x0 - dummy sync flag']
  #allocation4 [shape = 'u32[0]{0}', space=smem, size = 0, offset = 0, fixed_abs, tag = 'smem constant byte address 0x0 - null']
  %s0 = inlined_call_operand.hbm [shape: f32[16,32], index: 0, kind: input, shape index: {}]
  %s1 = inlined_call_operand.hbm [shape: f32[16,32], index: 1, kind: output, shape index: {}]
  %s2 = sld [smem:[#allocation0]]
  $region2: #{tpu_custom_call.1} parent=0
    _
  %s4 = ssub.s32 1, %s2
  %s5 = scalar_select 0, %s4, %s2
  %s7 = sshll.u32 1, 14
  %s8 = sxor.u32 4294967295, %s7
  %s10 = sshll.u32 %s0, 4
  %s11 = int_to_ptr.hbm [resolvable:$true] %s10
  %s12 = sshll.u32 %s1, 4
  %s13 = int_to_ptr.hbm [resolvable:$true] %s12
  %16 = dma.general %s11, 256, %s13, [#allocation2], [#allocation3], [#allocation4], 0, 0
  %s17 = smul.u32 16, 1
  %s18 = sshll.u32 %s17, 4
  %19 = dma.done [#allocation2], %s18
  %20 = vsyncmov [#allocation2]
  %s21 = vpop.sfrf %20
  %p22 = scmp.eq.s32.totalorder %s21, 0
  %p23 = pneg %p22
  %25 = shalt.err (%p23)

</llo_original>
